<compile_context>
chip_gen: v6e
topology: v6e:2x2x1
jax: 0.10.0
libtpu: 0.0.40
codegen_flags: <defaults>
</compile_context>

<pallas_src>
import functools

import numpy as np

import jax
import jax.numpy as jnp
from jax.experimental import pallas as pl
from jax.experimental.pallas import tpu as pltpu


def _sigmoid(x):
    # tanh-form sigmoid: one EUP tanh + cheap VPU mul/add, no divide.
    return 0.5 * (jnp.tanh(0.5 * x) + 1.0)


def _batch_tile(batch):
    """Largest tile in {128,64,32,16,8} dividing the batch, else whole batch."""
    for t in (128, 64, 32, 16, 8):
        if batch % t == 0:
            return t
    return batch


# ----------------------------------------------------------------------------
# Fused kernel: fc+deconv1(+ReLU) -> deconv2(+ReLU) -> deconv3(+Sigmoid)
#
# Scratch s1: rows (a, b) a in 0..7 (a=7 zero), cols (c, i)  c in 0..7 (c=7 zero)
# Scratch s2: rows (a, b),                      cols (c, j)  j = deconv2 phase+ch
# Output    : rows (a, b) a in 0..6,            cols (c, r, s) = 8*16 = 128 lanes
# ----------------------------------------------------------------------------
def _decoder_kernel(z_ref, w1_ref, b1_ref, w2a_ref, w2b_ref, b2_ref,
                    w3a_ref, w3b_ref, b3_ref, o_ref, s1_ref, s2_ref,
                    *, tb, L):
    n1 = 8 * L            # s1 lane width  (8 c-blocks x L channels)
    n2 = 16 * L           # s2 lane width  (8 c-blocks x 2L phase-channels)
    R = 7 * tb            # "real" rows (a in 0..6) x batch tile

    # ---- Stage 1: fc folded into the 7x7 deconv, + ReLU.  The folded weight
    # already carries the zero pad row (a=7) and pad column (c=7), so the
    # relayout below also (re)establishes the zero border every iteration.
    h1 = jnp.dot(z_ref[...], w1_ref[...], preferred_element_type=jnp.float32)
    h1 = jnp.maximum(h1 + b1_ref[...], 0.0)                    # (tb, 64L)
    for a in range(8):                                          # rows b -> (a, b)
        s1_ref[a * tb:(a + 1) * tb, :] = h1[:, a * n1:(a + 1) * n1]

    # ---- Stage 2: stride-2 deconv2 as two block-Toeplitz matmuls (row taps
    # dr=0 / dr=1; the c-shift lives inside the Toeplitz weights), + ReLU.
    y2 = jnp.dot(s1_ref[0:R, :], w2a_ref[...],
                 preferred_element_type=jnp.float32)
    y2 = y2 + jnp.dot(s1_ref[tb:R + tb, :], w2b_ref[...],
                      preferred_element_type=jnp.float32)
    s2_ref[0:R, :] = jnp.maximum(y2 + b2_ref[...], 0.0)
    # a=7 zero pad row (read by the DA=1 tap of stage 3); written every step
    # so no cross-iteration scratch state is assumed (safe under "parallel").
    s2_ref[R:R + tb, :] = jnp.zeros((tb, n2), jnp.float32)

    # ---- Stage 3: deconv3 composed onto the 7x7 grid (16 pixels per cell),
    # again two block-Toeplitz matmuls, + Sigmoid.  128-lane dense output;
    # the c=7 block is padding and is dropped in the wrapper.
    y3 = jnp.dot(s2_ref[0:R, :], w3a_ref[...],
                 preferred_element_type=jnp.float32)
    y3 = y3 + jnp.dot(s2_ref[tb:R + tb, :], w3b_ref[...],
                      preferred_element_type=jnp.float32)
    o_ref[...] = _sigmoid(y3 + b3_ref[...])


# ----------------------------------------------------------------------------
# One-time parameter preparation (hoisted out of the jitted forward).
# ----------------------------------------------------------------------------
def prepare_params(params):
    fc_w = np.asarray(params["fc_w"], np.float64)   # (2L, L)
    fc_b = np.asarray(params["fc_b"], np.float64)   # (2L,)
    d1_w = np.asarray(params["d1_w"], np.float64)   # (2L, L, 7, 7)
    d1_b = np.asarray(params["d1_b"], np.float64)   # (L,)
    d2_w = np.asarray(params["d2_w"], np.float64)   # (L, L//2, 3, 3)
    d2_b = np.asarray(params["d2_b"], np.float64)   # (L//2,)
    d3_w = np.asarray(params["d3_w"], np.float64)   # (L//2, 1, 3, 3)
    d3_b = np.asarray(params["d3_b"], np.float64)   # (1,)

    L = d1_w.shape[1]
    C2 = L // 2
    n2 = 4 * C2                                     # = 2L, stage-2 phase+channel

    # For stride-2 / k=3 / pad=1 transposed conv, output parity d with input
    # offset dr uses kernel index KOF[(d, dr)]  (None = no tap).
    KOF = {(0, 0): 1, (0, 1): None, (1, 0): 2, (1, 1): 0}

    # ---- Stage 1: deconv1 on a 1x1 input is a matmul.  Columns (a, c, i)
    # over an 8x8 padded grid (a=7 / c=7 blocks zero); fold the fc in front.
    w1g = np.zeros((2 * L, 8 * 8 * L))
    b1g = np.zeros((8 * 8 * L,))
    for a in range(7):
        for c in range(7):
            col = (a * 8 + c) * L
            w1g[:, col:col + L] = d1_w[:, :, a, c]
            b1g[col:col + L] = d1_b
    w1 = fc_w.T @ w1g                               # (L, 64L)
    b1 = fc_b @ w1g + b1g                           # (64L,)

    # ---- Stage 2: phase-decomposed deconv2 weights w2p[dr, dc, i, j],
    # j = (dy*2 + dx)*C2 + co.
    w2p = np.zeros((2, 2, L, n2))
    for dy in (0, 1):
        for dx in (0, 1):
            j0 = (dy * 2 + dx) * C2
            for dr in (0, 1):
                ky = KOF[(dy, dr)]
                if ky is None:
                    continue
                for dc in (0, 1):
                    kx = KOF[(dx, dc)]
                    if kx is None:
                        continue
                    w2p[dr, dc, :, j0:j0 + C2] = d2_w[:, :, ky, kx]
    # Block-Toeplitz over the padded c axis: (8L, 8*n2) per dr tap.
    w2t = np.zeros((2, 8 * L, 8 * n2))
    b2t = np.zeros((8 * n2,))
    for co in range(7):                             # c_out = 7 stays zero (pad)
        b2t[co * n2:(co + 1) * n2] = np.tile(d2_b, 4)
        for dc in (0, 1):
            ci = co + dc
            for dr in (0, 1):
                w2t[dr, ci * L:(ci + 1) * L, co * n2:(co + 1) * n2] = w2p[dr, dc]

    # ---- Stage 3: deconv3 composed onto the 7x7 super-grid.
    # w3c[DA, DC, (pr*2+pc)*C2 + co2, r*4+s]: pixel (4a+r, 4c+s) from y2 taps
    # at super-cell (a+DA, c+DC), stage-2 phase (pr, pc).
    w3c = np.zeros((2, 2, n2, 16))
    for r in range(4):
        rh, ey = r // 2, r % 2
        for s in range(4):
            ch, ex = s // 2, s % 2
            col = r * 4 + s
            for dr in (0, 1):
                ky = KOF[(ey, dr)]
                if ky is None:
                    continue
                v = rh + dr
                DA, pr = v // 2, v % 2
                for dc in (0, 1):
                    kx = KOF[(ex, dc)]
                    if kx is None:
                        continue
                    u = ch + dc
                    DC, pc = u // 2, u % 2
                    j0 = (pr * 2 + pc) * C2
                    w3c[DA, DC, j0:j0 + C2, col] += d3_w[:, 0, ky, kx]
    # Block-Toeplitz over c: (8*n2, 128) per DA tap; output cols = (c, r, s).
    w3t = np.zeros((2, 8 * n2, 128))
    b3t = np.full((128,), d3_b[0])
    for co in range(7):
        for DC in (0, 1):
            ci = co + DC
            for DA in (0, 1):
                w3t[DA, ci * n2:(ci + 1) * n2, co * 16:(co + 1) * 16] = w3c[DA, DC]

    f32 = lambda a: jnp.asarray(a, jnp.float32)
    # TODO(synk): cast matmul operands to bf16 for v6e/v7x once the accuracy
    # budget allows (kept f32 here to hold the 2e-4 check).
    return dict(
        w1=f32(w1), b1=f32(b1.reshape(1, -1)),
        w2a=f32(w2t[0]), w2b=f32(w2t[1]), b2=f32(b2t.reshape(1, -1)),
        w3a=f32(w3t[0]), w3b=f32(w3t[1]), b3=f32(b3t.reshape(1, -1)),
    )


# ----------------------------------------------------------------------------
# Decoder forward: ONE pallas_call + a tiny wrapper reshape.
# ----------------------------------------------------------------------------
def decoder_forward(prep, z):
    B, L = z.shape
    tb = _batch_tile(B)
    nb = B // tb
    n1 = 8 * L
    n2 = 16 * L

    kernel = functools.partial(_decoder_kernel, tb=tb, L=L)
    out = pl.pallas_call(
        kernel,
        out_shape=jax.ShapeDtypeStruct((nb * 7 * tb, 128), jnp.float32),
        grid_spec=pltpu.PrefetchScalarGridSpec(
            num_scalar_prefetch=0,
            grid=(nb,),
            in_specs=[
                pl.BlockSpec((tb, L), lambda i: (i, 0)),          # z rows
                pl.BlockSpec((L, 8 * n1), lambda i: (0, 0)),      # fc+deconv1 (resident)
                pl.BlockSpec((1, 8 * n1), lambda i: (0, 0)),
                pl.BlockSpec((n1, n2), lambda i: (0, 0)),         # deconv2 Toeplitz dr=0
                pl.BlockSpec((n1, n2), lambda i: (0, 0)),         # deconv2 Toeplitz dr=1
                pl.BlockSpec((1, n2), lambda i: (0, 0)),
                pl.BlockSpec((n2, 128), lambda i: (0, 0)),        # deconv3 Toeplitz DA=0
                pl.BlockSpec((n2, 128), lambda i: (0, 0)),        # deconv3 Toeplitz DA=1
                pl.BlockSpec((1, 128), lambda i: (0, 0)),
            ],
            out_specs=pl.BlockSpec((7 * tb, 128), lambda i: (i, 0)),
            scratch_shapes=[
                pltpu.VMEM((8 * tb, n1), jnp.float32),            # s1 (7x7 act, padded)
                pltpu.VMEM((8 * tb, n2), jnp.float32),            # s2 (14x14 act, padded)
            ],
        ),
        compiler_params=pltpu.CompilerParams(
            dimension_semantics=("parallel",)),
    )(z, prep["w1"], prep["b1"], prep["w2a"], prep["w2b"], prep["b2"],
      prep["w3a"], prep["w3b"], prep["b3"])

    # rows = (tile, a, b_local); cols = (c, r, s).  Assemble img[b, 4a+r, 4c+s].
    img = out.reshape(nb, 7, tb, 8, 4, 4)
    img = img.transpose(0, 2, 1, 4, 3, 5)[:, :, :, :, :7, :]   # drop c=7 pad block
    return img.reshape(B, 1, 28, 28)


# ----------------------------------------------------------------------------
# Deterministic parameter init (shapes from the PyTorch module __init__)
# ----------------------------------------------------------------------------
def init_params(key, latent_dim):
    L = latent_dim
    ks = jax.random.split(key, 8)

    def u(k, shape, fan_in):
        bound = 1.0 / np.sqrt(fan_in)
        return jax.random.uniform(k, shape, jnp.float32, -bound, bound)

    return dict(
        fc_w=u(ks[0], (2 * L, L), L),
        fc_b=u(ks[1], (2 * L,), L),
        d1_w=u(ks[2], (2 * L, L, 7, 7), 2 * L * 49),
        d1_b=u(ks[3], (L,), 2 * L * 49),
        d2_w=u(ks[4], (L, L // 2, 3, 3), L * 9),
        d2_b=u(ks[5], (L // 2,), L * 9),
        d3_w=u(ks[6], (L // 2, 1, 3, 3), (L // 2) * 9),
        d3_b=u(ks[7], (1,), (L // 2) * 9),
    )


# ----------------------------------------------------------------------------
# Pure-JAX reference (XLA convs) for validation
# ----------------------------------------------------------------------------
def _convT_ref(x, w, b, stride, padding, out_padding):
    k = w.shape[2]
    wc = jnp.flip(w, axis=(2, 3)).transpose(1, 0, 2, 3)   # (Cout,Cin,kh,kw)
    y = jax.lax.conv_general_dilated(
        x, wc, window_strides=(1, 1),
        padding=[(k - 1 - padding, k - 1 - padding + out_padding)] * 2,
        lhs_dilation=(stride, stride),
        dimension_numbers=("NCHW", "OIHW", "NCHW"),
        precision=jax.lax.Precision.HIGHEST)
    return y + b[None, :, None, None]


def decoder_ref(params, z):
    L = params["fc_b"].shape[0] // 2
    h = jnp.dot(z, params["fc_w"].T,
                precision=jax.lax.Precision.HIGHEST) + params["fc_b"]
    x = h.reshape(z.shape[0], 2 * L, 1, 1)
    x = jax.nn.relu(_convT_ref(x, params["d1_w"], params["d1_b"], 1, 0, 0))
    x = jax.nn.relu(_convT_ref(x, params["d2_w"], params["d2_b"], 2, 1, 1))
    x = jax.nn.sigmoid(_convT_ref(x, params["d3_w"], params["d3_b"], 2, 1, 1))
    return x


if __name__ == "__main__":
    latent_dim = 16      # small latent dim (module default is 64)

    key = jax.random.PRNGKey(0)
    pkey, zkey = jax.random.split(key)
    params = init_params(pkey, latent_dim)
    prep = prepare_params(params)          # one-time, outside the jitted forward

    fwd = jax.jit(decoder_forward)

    # batch=2 exercises the single-tile path; batch=24 exercises a 3-step grid.
    for batch in (2, 24):
        z = jax.random.uniform(jax.random.fold_in(zkey, batch),
                               (batch, latent_dim), jnp.float32, -1.0, 1.0)
        out = jax.block_until_ready(fwd(prep, z))
        assert out.shape == (batch, 1, 28, 28), out.shape
        ref = decoder_ref(params, z)
        np.testing.assert_allclose(np.asarray(out), np.asarray(ref),
                                   rtol=2e-4, atol=2e-4)

    print("KERNEL_OK")
</pallas_src>

<mosaic_0001>
module attributes {stable_mosaic.version = 11 : i64} {
  func.func @_decoder_kernel(%arg0: i32, %arg1: memref<2x16xf32, #tpu.memory_space<vmem>>, %arg2: memref<16x1024xf32, #tpu.memory_space<vmem>>, %arg3: memref<1x1024xf32, #tpu.memory_space<vmem>>, %arg4: memref<128x256xf32, #tpu.memory_space<vmem>>, %arg5: memref<128x256xf32, #tpu.memory_space<vmem>>, %arg6: memref<1x256xf32, #tpu.memory_space<vmem>>, %arg7: memref<256x128xf32, #tpu.memory_space<vmem>>, %arg8: memref<256x128xf32, #tpu.memory_space<vmem>>, %arg9: memref<1x128xf32, #tpu.memory_space<vmem>>, %arg10: memref<14x128xf32, #tpu.memory_space<vmem>>, %arg11: memref<16x128xf32, #tpu.memory_space<vmem>>, %arg12: memref<16x256xf32, #tpu.memory_space<vmem>>) attributes {dimension_semantics = [#tpu.dimension_semantics<parallel>], iteration_bounds = array<i64: 1>, scalar_prefetch = 0 : i64, scratch_operands = 2 : i64, tpu.core_type = #tpu.core_type<tc>, window_params = [{transform_indices = @transform_0, window_bounds = array<i64: 2, 16>}, {pipeline_mode = #tpu.pipeline_mode<synchronous>, transform_indices = @transform_1, window_bounds = array<i64: 16, 1024>}, {pipeline_mode = #tpu.pipeline_mode<synchronous>, transform_indices = @transform_2, window_bounds = array<i64: 1, 1024>}, {pipeline_mode = #tpu.pipeline_mode<synchronous>, transform_indices = @transform_3, window_bounds = array<i64: 128, 256>}, {pipeline_mode = #tpu.pipeline_mode<synchronous>, transform_indices = @transform_4, window_bounds = array<i64: 128, 256>}, {pipeline_mode = #tpu.pipeline_mode<synchronous>, transform_indices = @transform_5, window_bounds = array<i64: 1, 256>}, {pipeline_mode = #tpu.pipeline_mode<synchronous>, transform_indices = @transform_6, window_bounds = array<i64: 256, 128>}, {pipeline_mode = #tpu.pipeline_mode<synchronous>, transform_indices = @transform_7, window_bounds = array<i64: 256, 128>}, {pipeline_mode = #tpu.pipeline_mode<synchronous>, transform_indices = @transform_8, window_bounds = array<i64: 1, 128>}, {transform_indices = @transform_9, window_bounds = array<i64: 14, 128>}]} {
    %c0 = arith.constant 0 : index
    %c0_0 = arith.constant 0 : index
    %0 = vector.load %arg1[%c0, %c0_0] : memref<2x16xf32, #tpu.memory_space<vmem>>, vector<2x16xf32>
    %c0_1 = arith.constant 0 : index
    %c0_2 = arith.constant 0 : index
    %1 = vector.load %arg2[%c0_1, %c0_2] : memref<16x1024xf32, #tpu.memory_space<vmem>>, vector<16x1024xf32>
    %cst = arith.constant dense<0.000000e+00> : vector<2x1024xf32>
    %2 = tpu.matmul %0, %1, %cst {dimension_numbers = #tpu.dot_dimension_numbers<[1], [0], [0], [1], [0, 0, 1, 1], [], []>} : vector<2x16xf32>, vector<16x1024xf32>, vector<2x1024xf32> -> vector<2x1024xf32>
    %c0_3 = arith.constant 0 : index
    %c0_4 = arith.constant 0 : index
    %3 = vector.load %arg3[%c0_3, %c0_4] : memref<1x1024xf32, #tpu.memory_space<vmem>>, vector<1x1024xf32>
    %4 = vector.broadcast %3 : vector<1x1024xf32> to vector<2x1024xf32>
    %5 = arith.addf %2, %4 : vector<2x1024xf32>
    %cst_5 = arith.constant 0.000000e+00 : f32
    %6 = vector.broadcast %cst_5 : f32 to vector<2x1024xf32>
    %7 = arith.maximumf %5, %6 : vector<2x1024xf32>
    %8 = vector.extract_strided_slice %7 {offsets = [0, 0], sizes = [2, 128], strides = [1, 1]} : vector<2x1024xf32> to vector<2x128xf32>
    %c0_6 = arith.constant 0 : index
    %c0_7 = arith.constant 0 : index
    %9 = vector.load %arg11[%c0_6, %c0_7] : memref<16x128xf32, #tpu.memory_space<vmem>>, vector<2x128xf32>
    tpu.vector_store %arg11[%c0_6, %c0_7], %8 {strides = array<i32>} : memref<16x128xf32, #tpu.memory_space<vmem>>, vector<2x128xf32>,
    %10 = vector.extract_strided_slice %7 {offsets = [0, 128], sizes = [2, 128], strides = [1, 1]} : vector<2x1024xf32> to vector<2x128xf32>
    %c2 = arith.constant 2 : index
    %c0_8 = arith.constant 0 : index
    %11 = vector.load %arg11[%c2, %c0_8] : memref<16x128xf32, #tpu.memory_space<vmem>>, vector<2x128xf32>
    tpu.vector_store %arg11[%c2, %c0_8], %10 {strides = array<i32>} : memref<16x128xf32, #tpu.memory_space<vmem>>, vector<2x128xf32>,
    %12 = vector.extract_strided_slice %7 {offsets = [0, 256], sizes = [2, 128], strides = [1, 1]} : vector<2x1024xf32> to vector<2x128xf32>
    %c4 = arith.constant 4 : index
    %c0_9 = arith.constant 0 : index
    %13 = vector.load %arg11[%c4, %c0_9] : memref<16x128xf32, #tpu.memory_space<vmem>>, vector<2x128xf32>
    tpu.vector_store %arg11[%c4, %c0_9], %12 {strides = array<i32>} : memref<16x128xf32, #tpu.memory_space<vmem>>, vector<2x128xf32>,
    %14 = vector.extract_strided_slice %7 {offsets = [0, 384], sizes = [2, 128], strides = [1, 1]} : vector<2x1024xf32> to vector<2x128xf32>
    %c6 = arith.constant 6 : index
    %c0_10 = arith.constant 0 : index
    %15 = vector.load %arg11[%c6, %c0_10] : memref<16x128xf32, #tpu.memory_space<vmem>>, vector<2x128xf32>
    tpu.vector_store %arg11[%c6, %c0_10], %14 {strides = array<i32>} : memref<16x128xf32, #tpu.memory_space<vmem>>, vector<2x128xf32>,
    %16 = vector.extract_strided_slice %7 {offsets = [0, 512], sizes = [2, 128], strides = [1, 1]} : vector<2x1024xf32> to vector<2x128xf32>
    %c8 = arith.constant 8 : index
    %c0_11 = arith.constant 0 : index
    %17 = vector.load %arg11[%c8, %c0_11] : memref<16x128xf32, #tpu.memory_space<vmem>>, vector<2x128xf32>
    tpu.vector_store %arg11[%c8, %c0_11], %16 {strides = array<i32>} : memref<16x128xf32, #tpu.memory_space<vmem>>, vector<2x128xf32>,
    %18 = vector.extract_strided_slice %7 {offsets = [0, 640], sizes = [2, 128], strides = [1, 1]} : vector<2x1024xf32> to vector<2x128xf32>
    %c10 = arith.constant 10 : index
    %c0_12 = arith.constant 0 : index
    %19 = vector.load %arg11[%c10, %c0_12] : memref<16x128xf32, #tpu.memory_space<vmem>>, vector<2x128xf32>
    tpu.vector_store %arg11[%c10, %c0_12], %18 {strides = array<i32>} : memref<16x128xf32, #tpu.memory_space<vmem>>, vector<2x128xf32>,
    %20 = vector.extract_strided_slice %7 {offsets = [0, 768], sizes = [2, 128], strides = [1, 1]} : vector<2x1024xf32> to vector<2x128xf32>
    %c12 = arith.constant 12 : index
    %c0_13 = arith.constant 0 : index
    %21 = vector.load %arg11[%c12, %c0_13] : memref<16x128xf32, #tpu.memory_space<vmem>>, vector<2x128xf32>
    tpu.vector_store %arg11[%c12, %c0_13], %20 {strides = array<i32>} : memref<16x128xf32, #tpu.memory_space<vmem>>, vector<2x128xf32>,
    %22 = vector.extract_strided_slice %7 {offsets = [0, 896], sizes = [2, 128], strides = [1, 1]} : vector<2x1024xf32> to vector<2x128xf32>
    %c14 = arith.constant 14 : index
    %c0_14 = arith.constant 0 : index
    %23 = vector.load %arg11[%c14, %c0_14] : memref<16x128xf32, #tpu.memory_space<vmem>>, vector<2x128xf32>
    tpu.vector_store %arg11[%c14, %c0_14], %22 {strides = array<i32>} : memref<16x128xf32, #tpu.memory_space<vmem>>, vector<2x128xf32>,
    %c0_15 = arith.constant 0 : index
    %c0_16 = arith.constant 0 : index
    %24 = vector.load %arg11[%c0_15, %c0_16] : memref<16x128xf32, #tpu.memory_space<vmem>>, vector<14x128xf32>
    %c0_17 = arith.constant 0 : index
    %c0_18 = arith.constant 0 : index
    %25 = vector.load %arg4[%c0_17, %c0_18] : memref<128x256xf32, #tpu.memory_space<vmem>>, vector<128x256xf32>
    %cst_19 = arith.constant dense<0.000000e+00> : vector<14x256xf32>
    %26 = tpu.matmul %24, %25, %cst_19 {dimension_numbers = #tpu.dot_dimension_numbers<[1], [0], [0], [1], [0, 0, 1, 1], [], []>} : vector<14x128xf32>, vector<128x256xf32>, vector<14x256xf32> -> vector<14x256xf32>
    %c2_20 = arith.constant 2 : index
    %c0_21 = arith.constant 0 : index
    %27 = vector.load %arg11[%c2_20, %c0_21] : memref<16x128xf32, #tpu.memory_space<vmem>>, vector<14x128xf32>
    %c0_22 = arith.constant 0 : index
    %c0_23 = arith.constant 0 : index
    %28 = vector.load %arg5[%c0_22, %c0_23] : memref<128x256xf32, #tpu.memory_space<vmem>>, vector<128x256xf32>
    %cst_24 = arith.constant dense<0.000000e+00> : vector<14x256xf32>
    %29 = tpu.matmul %27, %28, %cst_24 {dimension_numbers = #tpu.dot_dimension_numbers<[1], [0], [0], [1], [0, 0, 1, 1], [], []>} : vector<14x128xf32>, vector<128x256xf32>, vector<14x256xf32> -> vector<14x256xf32>
    %30 = arith.addf %26, %29 : vector<14x256xf32>
    %c0_25 = arith.constant 0 : index
    %c0_26 = arith.constant 0 : index
    %31 = vector.load %arg6[%c0_25, %c0_26] : memref<1x256xf32, #tpu.memory_space<vmem>>, vector<1x256xf32>
    %32 = vector.broadcast %31 : vector<1x256xf32> to vector<14x256xf32>
    %33 = arith.addf %30, %32 : vector<14x256xf32>
    %cst_27 = arith.constant 0.000000e+00 : f32
    %34 = vector.broadcast %cst_27 : f32 to vector<14x256xf32>
    %35 = arith.maximumf %33, %34 : vector<14x256xf32>
    %c0_28 = arith.constant 0 : index
    %c0_29 = arith.constant 0 : index
    %36 = vector.load %arg12[%c0_28, %c0_29] : memref<16x256xf32, #tpu.memory_space<vmem>>, vector<14x256xf32>
    tpu.vector_store %arg12[%c0_28, %c0_29], %35 {strides = array<i32>} : memref<16x256xf32, #tpu.memory_space<vmem>>, vector<14x256xf32>,
    %cst_30 = arith.constant 0.000000e+00 : f32
    %37 = vector.broadcast %cst_30 : f32 to vector<2x256xf32>
    %c14_31 = arith.constant 14 : index
    %c0_32 = arith.constant 0 : index
    %38 = vector.load %arg12[%c14_31, %c0_32] : memref<16x256xf32, #tpu.memory_space<vmem>>, vector<2x256xf32>
    tpu.vector_store %arg12[%c14_31, %c0_32], %37 {strides = array<i32>} : memref<16x256xf32, #tpu.memory_space<vmem>>, vector<2x256xf32>,
    %c0_33 = arith.constant 0 : index
    %c0_34 = arith.constant 0 : index
    %39 = vector.load %arg12[%c0_33, %c0_34] : memref<16x256xf32, #tpu.memory_space<vmem>>, vector<14x256xf32>
    %c0_35 = arith.constant 0 : index
    %c0_36 = arith.constant 0 : index
    %40 = vector.load %arg7[%c0_35, %c0_36] : memref<256x128xf32, #tpu.memory_space<vmem>>, vector<256x128xf32>
    %cst_37 = arith.constant dense<0.000000e+00> : vector<14x128xf32>
    %41 = tpu.matmul %39, %40, %cst_37 {dimension_numbers = #tpu.dot_dimension_numbers<[1], [0], [0], [1], [0, 0, 1, 1], [], []>} : vector<14x256xf32>, vector<256x128xf32>, vector<14x128xf32> -> vector<14x128xf32>
    %c2_38 = arith.constant 2 : index
    %c0_39 = arith.constant 0 : index
    %42 = vector.load %arg12[%c2_38, %c0_39] : memref<16x256xf32, #tpu.memory_space<vmem>>, vector<14x256xf32>
    %c0_40 = arith.constant 0 : index
    %c0_41 = arith.constant 0 : index
    %43 = vector.load %arg8[%c0_40, %c0_41] : memref<256x128xf32, #tpu.memory_space<vmem>>, vector<256x128xf32>
    %cst_42 = arith.constant dense<0.000000e+00> : vector<14x128xf32>
    %44 = tpu.matmul %42, %43, %cst_42 {dimension_numbers = #tpu.dot_dimension_numbers<[1], [0], [0], [1], [0, 0, 1, 1], [], []>} : vector<14x256xf32>, vector<256x128xf32>, vector<14x128xf32> -> vector<14x128xf32>
    %45 = arith.addf %41, %44 : vector<14x128xf32>
    %c0_43 = arith.constant 0 : index
    %c0_44 = arith.constant 0 : index
    %46 = vector.load %arg9[%c0_43, %c0_44] : memref<1x128xf32, #tpu.memory_space<vmem>>, vector<1x128xf32>
    %47 = vector.broadcast %46 : vector<1x128xf32> to vector<14x128xf32>
    %48 = arith.addf %45, %47 : vector<14x128xf32>
    %cst_45 = arith.constant 5.000000e-01 : f32
    %49 = vector.broadcast %cst_45 : f32 to vector<14x128xf32>
    %50 = arith.mulf %49, %48 : vector<14x128xf32>
    %51 = math.tanh %50 : vector<14x128xf32>
    %cst_46 = arith.constant 1.000000e+00 : f32
    %52 = vector.broadcast %cst_46 : f32 to vector<14x128xf32>
    %53 = arith.addf %51, %52 : vector<14x128xf32>
    %cst_47 = arith.constant 5.000000e-01 : f32
    %54 = vector.broadcast %cst_47 : f32 to vector<14x128xf32>
    %55 = arith.mulf %54, %53 : vector<14x128xf32>
    %c0_48 = arith.constant 0 : index
    %c0_49 = arith.constant 0 : index
    %56 = vector.load %arg10[%c0_48, %c0_49] : memref<14x128xf32, #tpu.memory_space<vmem>>, vector<14x128xf32>
    tpu.vector_store %arg10[%c0_48, %c0_49], %55 {strides = array<i32>} : memref<14x128xf32, #tpu.memory_space<vmem>>, vector<14x128xf32>,
    return
  }
  func.func @transform_0(%arg0: i32) -> (i32, i32) {
    %c0_i32 = arith.constant 0 : i32
    %c0_i32_0 = arith.constant 0 : i32
    return %arg0, %c0_i32 : i32, i32
  }
  func.func @transform_1(%arg0: i32) -> (i32, i32) {
    %c0_i32 = arith.constant 0 : i32
    %c0_i32_0 = arith.constant 0 : i32
    %c0_i32_1 = arith.constant 0 : i32
    return %c0_i32, %c0_i32_0 : i32, i32
  }
  func.func @transform_2(%arg0: i32) -> (i32, i32) {
    %c0_i32 = arith.constant 0 : i32
    %c0_i32_0 = arith.constant 0 : i32
    %c0_i32_1 = arith.constant 0 : i32
    return %c0_i32, %c0_i32_0 : i32, i32
  }
  func.func @transform_3(%arg0: i32) -> (i32, i32) {
    %c0_i32 = arith.constant 0 : i32
    %c0_i32_0 = arith.constant 0 : i32
    %c0_i32_1 = arith.constant 0 : i32
    return %c0_i32, %c0_i32_0 : i32, i32
  }
  func.func @transform_4(%arg0: i32) -> (i32, i32) {
    %c0_i32 = arith.constant 0 : i32
    %c0_i32_0 = arith.constant 0 : i32
    %c0_i32_1 = arith.constant 0 : i32
    return %c0_i32, %c0_i32_0 : i32, i32
  }
  func.func @transform_5(%arg0: i32) -> (i32, i32) {
    %c0_i32 = arith.constant 0 : i32
    %c0_i32_0 = arith.constant 0 : i32
    %c0_i32_1 = arith.constant 0 : i32
    return %c0_i32, %c0_i32_0 : i32, i32
  }
  func.func @transform_6(%arg0: i32) -> (i32, i32) {
    %c0_i32 = arith.constant 0 : i32
    %c0_i32_0 = arith.constant 0 : i32
    %c0_i32_1 = arith.constant 0 : i32
    return %c0_i32, %c0_i32_0 : i32, i32
  }
  func.func @transform_7(%arg0: i32) -> (i32, i32) {
    %c0_i32 = arith.constant 0 : i32
    %c0_i32_0 = arith.constant 0 : i32
    %c0_i32_1 = arith.constant 0 : i32
    return %c0_i32, %c0_i32_0 : i32, i32
  }
  func.func @transform_8(%arg0: i32) -> (i32, i32) {
    %c0_i32 = arith.constant 0 : i32
    %c0_i32_0 = arith.constant 0 : i32
    %c0_i32_1 = arith.constant 0 : i32
    return %c0_i32, %c0_i32_0 : i32, i32
  }
  func.func @transform_9(%arg0: i32) -> (i32, i32) {
    %c0_i32 = arith.constant 0 : i32
    %c0_i32_0 = arith.constant 0 : i32
    return %arg0, %c0_i32 : i32, i32
  }
}

</mosaic_0001>

<llo_original>
// kernel: decoder_forward.1
$region0: #{decoder_forward.1}
  #allocation0 [shape = 'u32[]', space=smem, size = 0x4, offset = 0x4, fixed_abs, tag = 'smem constant byte address 0x4 - core index']
  #allocation1 [shape = 'u32[144,128]{1,0:T(1,128)}', space=vmem, size = 0x12000, scoped, tag = 'internal scratch']
  #allocation2 [shape = 'f32[16,128]{1,0:T(8,128)}', space=vmem, size = 0x2000, scoped, tag = 'scratch operand']
  #allocation3 [shape = 'f32[16,256]{1,0:T(8,128)}', space=vmem, size = 0x4000, scoped, tag = 'scratch operand']
  %s0 = inlined_call_operand.vmem [shape: f32[2,16], index: 0, kind: input, shape index: {}]
  %s1 = inlined_call_operand.hbm [shape: f32[16,1024], index: 1, kind: input, shape index: {}]
  %s2 = inlined_call_operand.hbm [shape: f32[1,1024], index: 2, kind: input, shape index: {}]
  %s3 = inlined_call_operand.hbm [shape: f32[128,256], index: 3, kind: input, shape index: {}]
  %s4 = inlined_call_operand.hbm [shape: f32[128,256], index: 4, kind: input, shape index: {}]
  %s5 = inlined_call_operand.hbm [shape: f32[1,256], index: 5, kind: input, shape index: {}]
  %s6 = inlined_call_operand.hbm [shape: f32[256,128], index: 6, kind: input, shape index: {}]
  %s7 = inlined_call_operand.hbm [shape: f32[256,128], index: 7, kind: input, shape index: {}]
  %s8 = inlined_call_operand.vmem [shape: f32[1,128], index: 8, kind: input, shape index: {}]
  %s9 = inlined_call_operand.vmem [shape: f32[14,128], index: 9, kind: output, shape index: {}]
  %s10 = sld [smem:[#allocation0]]
  $region74: #{decoder_forward.1} parent=0
    _
  %s12 = ssub.s32 1, %s10
  %s13 = scalar_select 0, %s12, %s10
  $region1: #{decoder_forward.1} parent=0
    #allocation4 [shape = 'u8[65536]{0}', space=vmem, size = 0x10000, scoped, tag = 'input window, operand 1, single buffered']
    #allocation5 [shape = 's32[1]{0}', space=sflag, size = 0x4, scoped, tag = 'scoped memory for decoder_forward.1']
    #allocation6 [shape = 'u8[4096]{0}', space=vmem, size = 0x1000, scoped, tag = 'input window, operand 2, single buffered']
    #allocation7 [shape = 's32[1]{0}', space=sflag, size = 0x4, scoped, tag = 'scoped memory for decoder_forward.1']
    #allocation8 [shape = 'u8[131072]{0}', space=vmem, size = 0x20000, scoped, tag = 'input window, operand 3, single buffered']
    #allocation9 [shape = 'u8[131072]{0}', space=vmem, size = 0x20000, scoped, tag = 'input window, operand 4, single buffered']
    #allocation10 [shape = 's32[1]{0}', space=sflag, size = 0x4, scoped, tag = 'scoped memory for decoder_forward.1']
    #allocation11 [shape = 'u8[1024]{0}', space=vmem, size = 0x400, scoped, tag = 'input window, operand 5, single buffered']
    #allocation12 [shape = 'u8[131072]{0}', space=vmem, size = 0x20000, scoped, tag = 'input window, operand 6, single buffered']
    #allocation13 [shape = 's32[1]{0}', space=sflag, size = 0x4, scoped, tag = 'scoped memory for decoder_forward.1']
    #allocation14 [shape = 'u8[131072]{0}', space=vmem, size = 0x20000, scoped, tag = 'input window, operand 7, single buffered']
    %14 = vsyncpa [#allocation5], 0
    %15 = vsyncpa [#allocation7], 0
    %16 = vsyncpa [#allocation10], 0
    %17 = vsyncpa [#allocation13], 0
    // Predicated region
    $region2: #{decoder_forward.1} parent=1 // pred_check
      _
    $region3: #{decoder_forward.1} parent=1 // pred_check_branch
      %19 = sbr.rel (0) target = $region5
    $region4: #{decoder_forward.1} parent=1 // pred_region
      _
    $region5: #{decoder_forward.1} parent=1 // pred_fallthru
      _
    // Predicated region
    $region6: #{decoder_forward.1} parent=1 // pred_check
      _
    $region7: #{decoder_forward.1} parent=1 // pred_check_branch
      %21 = sbr.rel (0) target = $region9
    $region8: #{decoder_forward.1} parent=1 // pred_region
      %s23 = ssub.s32 2048, 2048
      %24 = vsyncadd [#allocation5], %s23
      %s25 = sshll.u32 [#allocation4], 4
      %s26 = int_to_ptr.vmem [resolvable:$true] %s25
      %31 = dma.hbm_to_vmem [thread:$0]  %s1, 2048, %s26, [#allocation5], 1024, 1024, 64
    $region9: #{decoder_forward.1} parent=1 // pred_fallthru
      _
    // Predicated region
    $region10: #{decoder_forward.1} parent=1 // pred_check
      _
    $region11: #{decoder_forward.1} parent=1 // pred_check_branch
      %33 = sbr.rel (0) target = $region13
    $region12: #{decoder_forward.1} parent=1 // pred_region
      %s35 = ssub.s32 128, 128
      %36 = vsyncadd [#allocation7], %s35
      %s38 = sshll.u32 [#allocation6], 4
      %s39 = int_to_ptr.vmem [resolvable:$true] %s38
      %41 = dma.hbm_to_vmem [thread:$0]  %s2, 128, %s39, [#allocation7]
    $region13: #{decoder_forward.1} parent=1 // pred_fallthru
      _
    // Predicated region
    $region14: #{decoder_forward.1} parent=1 // pred_check
      _
    $region15: #{decoder_forward.1} parent=1 // pred_check_branch
      %43 = sbr.rel (0) target = $region17
    $region16: #{decoder_forward.1} parent=1 // pred_region
      %s45 = ssub.s32 4096, 4096
      %46 = vsyncadd [#allocation7], %s45
      %s47 = sshll.u32 [#allocation8], 4
      %s48 = int_to_ptr.vmem [resolvable:$true] %s47
      %53 = dma.hbm_to_vmem [thread:$0]  %s3, 4096, %s48, [#allocation7], 256, 256, 16
    $region17: #{decoder_forward.1} parent=1 // pred_fallthru
      _
    // Predicated region
    $region18: #{decoder_forward.1} parent=1 // pred_check
      _
    $region19: #{decoder_forward.1} parent=1 // pred_check_branch
      %55 = sbr.rel (0) target = $region21
    $region20: #{decoder_forward.1} parent=1 // pred_region
      %s57 = ssub.s32 4096, 4096
      %58 = vsyncadd [#allocation10], %s57
      %s59 = sshll.u32 [#allocation9], 4
      %s60 = int_to_ptr.vmem [resolvable:$true] %s59
      %65 = dma.hbm_to_vmem [thread:$0]  %s4, 4096, %s60, [#allocation10], 256, 256, 16
    $region21: #{decoder_forward.1} parent=1 // pred_fallthru
      _
    // Predicated region
    $region22: #{decoder_forward.1} parent=1 // pred_check
      _
    $region23: #{decoder_forward.1} parent=1 // pred_check_branch
      %67 = sbr.rel (0) target = $region25
    $region24: #{decoder_forward.1} parent=1 // pred_region
      %s69 = ssub.s32 32, 32
      %70 = vsyncadd [#allocation10], %s69
      %s72 = sshll.u32 [#allocation11], 4
      %s73 = int_to_ptr.vmem [resolvable:$true] %s72
      %75 = dma.hbm_to_vmem [thread:$0]  %s5, 32, %s73, [#allocation10]
    $region25: #{decoder_forward.1} parent=1 // pred_fallthru
      _
    // Predicated region
    $region26: #{decoder_forward.1} parent=1 // pred_check
      _
    $region27: #{decoder_forward.1} parent=1 // pred_check_branch
      %77 = sbr.rel (0) target = $region29
    $region28: #{decoder_forward.1} parent=1 // pred_region
      %s79 = ssub.s32 4096, 4096
      %80 = vsyncadd [#allocation13], %s79
      %s81 = sshll.u32 [#allocation12], 4
      %s82 = int_to_ptr.vmem [resolvable:$true] %s81
      %87 = dma.hbm_to_vmem [thread:$0]  %s6, 4096, %s82, [#allocation13], 128, 128, 8
    $region29: #{decoder_forward.1} parent=1 // pred_fallthru
      _
    // Predicated region
    $region30: #{decoder_forward.1} parent=1 // pred_check
      _
    $region31: #{decoder_forward.1} parent=1 // pred_check_branch
      %89 = sbr.rel (0) target = $region33
    $region32: #{decoder_forward.1} parent=1 // pred_region
      %s91 = ssub.s32 4096, 4096
      %92 = vsyncadd [#allocation13], %s91
      %s93 = sshll.u32 [#allocation14], 4
      %s94 = int_to_ptr.vmem [resolvable:$true] %s93
      %99 = dma.hbm_to_vmem [thread:$0]  %s7, 4096, %s94, [#allocation13], 128, 128, 8
    $region33: #{decoder_forward.1} parent=1 // pred_fallthru
      _
    // Predicated region
    $region34: #{decoder_forward.1} parent=1 // pred_check
      _
    $region35: #{decoder_forward.1} parent=1 // pred_check_branch
      %101 = sbr.rel (0) target = $region37
    $region36: #{decoder_forward.1} parent=1 // pred_region
      _
    $region37: #{decoder_forward.1} parent=1 // pred_fallthru
      _
    // Predicated region
    $region38: #{decoder_forward.1} parent=1 // pred_check
      _
    $region39: #{decoder_forward.1} parent=1 // pred_check_branch
      %103 = sbr.rel (0) target = $region41
    $region40: #{decoder_forward.1} parent=1 // pred_region
      %104 = dma.done [#allocation5], 2048
    $region41: #{decoder_forward.1} parent=1 // pred_fallthru
      _
    // Predicated region
    $region42: #{decoder_forward.1} parent=1 // pred_check
      _
    $region43: #{decoder_forward.1} parent=1 // pred_check_branch
      %106 = sbr.rel (0) target = $region45
    $region44: #{decoder_forward.1} parent=1 // pred_region
      %107 = dma.done [#allocation7], 128
    $region45: #{decoder_forward.1} parent=1 // pred_fallthru
      _
    // Predicated region
    $region46: #{decoder_forward.1} parent=1 // pred_check
      _
    $region47: #{decoder_forward.1} parent=1 // pred_check_branch
      %109 = sbr.rel (0) target = $region49
    $region48: #{decoder_forward.1} parent=1 // pred_region
      %110 = dma.done [#allocation7], 4096
    $region49: #{decoder_forward.1} parent=1 // pred_fallthru
      _
    // Predicated region
    $region50: #{decoder_forward.1} parent=1 // pred_check
      _
    $region51: #{decoder_forward.1} parent=1 // pred_check_branch
      %112 = sbr.rel (0) target = $region53
    $region52: #{decoder_forward.1} parent=1 // pred_region
      %113 = dma.done [#allocation10], 4096
    $region53: #{decoder_forward.1} parent=1 // pred_fallthru
      _
    // Predicated region
    $region54: #{decoder_forward.1} parent=1 // pred_check
      _
    $region55: #{decoder_forward.1} parent=1 // pred_check_branch
      %115 = sbr.rel (0) target = $region57
    $region56: #{decoder_forward.1} parent=1 // pred_region
      %116 = dma.done [#allocation10], 32
    $region57: #{decoder_forward.1} parent=1 // pred_fallthru
      _
    // Predicated region
    $region58: #{decoder_forward.1} parent=1 // pred_check
      _
    $region59: #{decoder_forward.1} parent=1 // pred_check_branch
      %118 = sbr.rel (0) target = $region61
    $region60: #{decoder_forward.1} parent=1 // pred_region
      %119 = dma.done [#allocation13], 4096
    $region61: #{decoder_forward.1} parent=1 // pred_fallthru
      _
    // Predicated region
    $region62: #{decoder_forward.1} parent=1 // pred_check
      _
    $region63: #{decoder_forward.1} parent=1 // pred_check_branch
      %121 = sbr.rel (0) target = $region65
    $region64: #{decoder_forward.1} parent=1 // pred_region
      %122 = dma.done [#allocation13], 4096
    $region65: #{decoder_forward.1} parent=1 // pred_fallthru
      _
    %v123 = vld [vmem:[%s0] sm:$0x3]
    %v124 = vld [vmem:[#allocation4] sm:$0xff]
    %v125 = vld [vmem:[#allocation4 + $0x8] sm:$0xff]
    %v126 = vld [vmem:[#allocation4 + $0x10] sm:$0xff]
    %v127 = vld [vmem:[#allocation4 + $0x18] sm:$0xff]
    %v128 = vld [vmem:[#allocation4 + $0x20] sm:$0xff]
    %v129 = vld [vmem:[#allocation4 + $0x28] sm:$0xff]
    %v130 = vld [vmem:[#allocation4 + $0x30] sm:$0xff]
    %v131 = vld [vmem:[#allocation4 + $0x38] sm:$0xff]
    %v132 = vld [vmem:[#allocation4 + $0x40] sm:$0xff]
    %v133 = vld [vmem:[#allocation4 + $0x48] sm:$0xff]
    %v134 = vld [vmem:[#allocation4 + $0x50] sm:$0xff]
    %v135 = vld [vmem:[#allocation4 + $0x58] sm:$0xff]
    %v136 = vld [vmem:[#allocation4 + $0x60] sm:$0xff]
    %v137 = vld [vmem:[#allocation4 + $0x68] sm:$0xff]
    %v138 = vld [vmem:[#allocation4 + $0x70] sm:$0xff]
    %v139 = vld [vmem:[#allocation4 + $0x78] sm:$0xff]
    %v140 = vld [vmem:[#allocation6] sm:$0xff]
    %v142 = vlaneseq
    %v143 = vshrl.u32 %v142, 7
    %v144 = vsub.s32 0, %v143
    %v145 = vrot.slane %v140, %v144
    %v146 = vlaneseq
    %v147 = vshrl.u32 %v146, 7
    %v148 = vsub.s32 1, %v147
    %v149 = vrot.slane %v140, %v148
    %v150 = vlaneseq
    %v151 = vshrl.u32 %v150, 7
    %v152 = vsub.s32 2, %v151
    %v153 = vrot.slane %v140, %v152
    %v154 = vlaneseq
    %v155 = vshrl.u32 %v154, 7
    %v156 = vsub.s32 3, %v155
    %v157 = vrot.slane %v140, %v156
    %v158 = vlaneseq
    %v159 = vshrl.u32 %v158, 7
    %v160 = vsub.s32 4, %v159
    %v161 = vrot.slane %v140, %v160
    %v162 = vlaneseq
    %v163 = vshrl.u32 %v162, 7
    %v164 = vsub.s32 5, %v163
    %v165 = vrot.slane %v140, %v164
    %v166 = vlaneseq
    %v167 = vshrl.u32 %v166, 7
    %v168 = vsub.s32 6, %v167
    %v169 = vrot.slane %v140, %v168
    %v170 = vlaneseq
    %v171 = vshrl.u32 %v170, 7
    %v172 = vsub.s32 7, %v171
    %v173 = vrot.slane %v140, %v172
    %vm182 = vcmask 130048
    %v184 = vsel %vm182, %v123, 0
    %186 = vmatprep.subr.mxu0 0.0
    %187 = vmatpush1.msra.mxu0 0.0
    %188 = vmatprep.subr.mxu0 0.0
    %189 = vmatpush1.msra.mxu0 0.0
    %190 = vmatprep.subr.mxu0 0.0
    %191 = vmatpush1.msra.mxu0 0.0
    %192 = vmatprep.subr.mxu0 0.0
    %193 = vmatpush1.msra.mxu0 0.0
    %194 = vmatprep.subr.mxu0 0.0
    %195 = vmatpush1.msra.mxu0 0.0
    %196 = vmatprep.subr.mxu0 0.0
    %197 = vmatpush1.msra.mxu0 0.0
    %198 = vmatprep.subr.mxu0 0.0
    %199 = vmatpush1.msra.mxu0 0.0
    %200 = vmatprep.subr.mxu0 0.0
    %201 = vmatpush1.msra.mxu0 0.0
    %202 = vmatprep.subr.mxu0 0.0
    %203 = vmatpush1.msra.mxu0 0.0
    %204 = vmatprep.subr.mxu0 0.0
    %205 = vmatpush1.msra.mxu0 0.0
    %206 = vmatprep.subr.mxu0 0.0
    %207 = vmatpush1.msra.mxu0 0.0
    %208 = vmatprep.subr.mxu0 0.0
    %209 = vmatpush1.msra.mxu0 0.0
    %210 = vmatprep.subr.mxu0 0.0
    %211 = vmatpush1.msra.mxu0 0.0
    %212 = vmatprep.subr.mxu0 0.0
    %213 = vmatpush1.msra.mxu0 0.0
    %214 = vmatprep.subr.mxu0 %v133
    %215 = vmatpush1.msra.mxu0 %v132
    %216 = vmatprep.subr.mxu0 %v125
    %217 = vmatpush1.msra.mxu0 %v124
    %218 = vmatprep.subr.mxu0 0.0
    %219 = vmatpush2.msra.mxu0 0.0
    %220 = vmatprep.subr.mxu0 0.0
    %221 = vmatpush2.msra.mxu0 0.0
    %222 = vmatprep.subr.mxu0 0.0
    %223 = vmatpush2.msra.mxu0 0.0
    %224 = vmatprep.subr.mxu0 0.0
    %225 = vmatpush2.msra.mxu0 0.0
    %226 = vmatprep.subr.mxu0 0.0
    %227 = vmatpush2.msra.mxu0 0.0
    %228 = vmatprep.subr.mxu0 0.0
    %229 = vmatpush2.msra.mxu0 0.0
    %230 = vmatprep.subr.mxu0 0.0
    %231 = vmatpush2.msra.mxu0 0.0
    %232 = vmatprep.subr.mxu0 0.0
    %233 = vmatpush2.msra.mxu0 0.0
    %234 = vmatprep.subr.mxu0 0.0
    %235 = vmatpush2.msra.mxu0 0.0
    %236 = vmatprep.subr.mxu0 0.0
    %237 = vmatpush2.msra.mxu0 0.0
    %238 = vmatprep.subr.mxu0 0.0
    %239 = vmatpush2.msra.mxu0 0.0
    %240 = vmatprep.subr.mxu0 0.0
    %241 = vmatpush2.msra.mxu0 0.0
    %242 = vmatprep.subr.mxu0 0.0
    %243 = vmatpush2.msra.mxu0 0.0
    %244 = vmatprep.subr.mxu0 0.0
    %245 = vmatpush2.msra.mxu0 0.0
    %246 = vmatprep.subr.mxu0 0.0
    %247 = vmatpush2.msra.mxu0 0.0
    %248 = vmatprep.subr.mxu0 0.0
    %249 = vmatpush2.msra.mxu0 0.0
    %250 = vmatprep.mubr.f32.mxu0 0.0
    %251 = vmatmul.mubr.f32.gmra.mxu0 %v184
    %v252 = vpop.f32.mrf.mxu0
    %v253 = vadd.f32 %v145, %v252
    %v254 = vpop.f32.mrf.mxu0
    %v255 = vadd.f32 %v149, %v254
    %256 = vdwg.mxu0
    %257 = vmatprep.subr.mxu0 0.0
    %258 = vmatpush1.msra.mxu0 0.0
    %259 = vmatprep.subr.mxu0 0.0
    %260 = vmatpush1.msra.mxu0 0.0
    %261 = vmatprep.subr.mxu0 0.0
    %262 = vmatpush1.msra.mxu0 0.0
    %263 = vmatprep.subr.mxu0 0.0
    %264 = vmatpush1.msra.mxu0 0.0
    %265 = vmatprep.subr.mxu0 0.0
    %266 = vmatpush1.msra.mxu0 0.0
    %267 = vmatprep.subr.mxu0 0.0
    %268 = vmatpush1.msra.mxu0 0.0
    %269 = vmatprep.subr.mxu0 0.0
    %270 = vmatpush1.msra.mxu0 0.0
    %271 = vmatprep.subr.mxu0 0.0
    %272 = vmatpush1.msra.mxu0 0.0
    %273 = vmatprep.subr.mxu0 0.0
    %274 = vmatpush1.msra.mxu0 0.0
    %275 = vmatprep.subr.mxu0 0.0
    %276 = vmatpush1.msra.mxu0 0.0
    %277 = vmatprep.subr.mxu0 0.0
    %278 = vmatpush1.msra.mxu0 0.0
    %279 = vmatprep.subr.mxu0 0.0
    %280 = vmatpush1.msra.mxu0 0.0
    %281 = vmatprep.subr.mxu0 0.0
    %282 = vmatpush1.msra.mxu0 0.0
    %283 = vmatprep.subr.mxu0 0.0
    %284 = vmatpush1.msra.mxu0 0.0
    %285 = vmatprep.subr.mxu0 %v135
    %286 = vmatpush1.msra.mxu0 %v134
    %287 = vmatprep.subr.mxu0 %v127
    %288 = vmatpush1.msra.mxu0 %v126
    %289 = vmatprep.subr.mxu0 0.0
    %290 = vmatpush2.msra.mxu0 0.0
    %291 = vmatprep.subr.mxu0 0.0
    %292 = vmatpush2.msra.mxu0 0.0
    %293 = vmatprep.subr.mxu0 0.0
    %294 = vmatpush2.msra.mxu0 0.0
    %295 = vmatprep.subr.mxu0 0.0
    %296 = vmatpush2.msra.mxu0 0.0
    %297 = vmatprep.subr.mxu0 0.0
    %298 = vmatpush2.msra.mxu0 0.0
    %299 = vmatprep.subr.mxu0 0.0
    %300 = vmatpush2.msra.mxu0 0.0
    %301 = vmatprep.subr.mxu0 0.0
    %302 = vmatpush2.msra.mxu0 0.0
    %303 = vmatprep.subr.mxu0 0.0
    %304 = vmatpush2.msra.mxu0 0.0
    %305 = vmatprep.subr.mxu0 0.0
    %306 = vmatpush2.msra.mxu0 0.0
    %307 = vmatprep.subr.mxu0 0.0
    %308 = vmatpush2.msra.mxu0 0.0
    %309 = vmatprep.subr.mxu0 0.0
    %310 = vmatpush2.msra.mxu0 0.0
    %311 = vmatprep.subr.mxu0 0.0
    %312 = vmatpush2.msra.mxu0 0.0
    %313 = vmatprep.subr.mxu0 0.0
    %314 = vmatpush2.msra.mxu0 0.0
    %315 = vmatprep.subr.mxu0 0.0
    %316 = vmatpush2.msra.mxu0 0.0
    %317 = vmatprep.subr.mxu0 0.0
    %318 = vmatpush2.msra.mxu0 0.0
    %319 = vmatprep.subr.mxu0 0.0
    %320 = vmatpush2.msra.mxu0 0.0
    %321 = vmatprep.mubr.f32.mxu0 0.0
    %322 = vmatmul.mubr.f32.gmra.mxu0 %v184
    %v323 = vpop.f32.mrf.mxu0
    %v324 = vadd.f32 %v153, %v323
    %v325 = vpop.f32.mrf.mxu0
    %v326 = vadd.f32 %v157, %v325
    %327 = vdwg.mxu0
    %328 = vmatprep.subr.mxu0 0.0
    %329 = vmatpush1.msra.mxu0 0.0
    %330 = vmatprep.subr.mxu0 0.0
    %331 = vmatpush1.msra.mxu0 0.0
    %332 = vmatprep.subr.mxu0 0.0
    %333 = vmatpush1.msra.mxu0 0.0
    %334 = vmatprep.subr.mxu0 0.0
    %335 = vmatpush1.msra.mxu0 0.0
    %336 = vmatprep.subr.mxu0 0.0
    %337 = vmatpush1.msra.mxu0 0.0
    %338 = vmatprep.subr.mxu0 0.0
    %339 = vmatpush1.msra.mxu0 0.0
    %340 = vmatprep.subr.mxu0 0.0
    %341 = vmatpush1.msra.mxu0 0.0
    %342 = vmatprep.subr.mxu0 0.0
    %343 = vmatpush1.msra.mxu0 0.0
    %344 = vmatprep.subr.mxu0 0.0
    %345 = vmatpush1.msra.mxu0 0.0
    %346 = vmatprep.subr.mxu0 0.0
    %347 = vmatpush1.msra.mxu0 0.0
    %348 = vmatprep.subr.mxu0 0.0
    %349 = vmatpush1.msra.mxu0 0.0
    %350 = vmatprep.subr.mxu0 0.0
    %351 = vmatpush1.msra.mxu0 0.0
    %352 = vmatprep.subr.mxu0 0.0
    %353 = vmatpush1.msra.mxu0 0.0
    %354 = vmatprep.subr.mxu0 0.0
    %355 = vmatpush1.msra.mxu0 0.0
    %356 = vmatprep.subr.mxu0 %v137
    %357 = vmatpush1.msra.mxu0 %v136
    %358 = vmatprep.subr.mxu0 %v129
    %359 = vmatpush1.msra.mxu0 %v128
    %360 = vmatprep.subr.mxu0 0.0
    %361 = vmatpush2.msra.mxu0 0.0
    %362 = vmatprep.subr.mxu0 0.0
    %363 = vmatpush2.msra.mxu0 0.0
    %364 = vmatprep.subr.mxu0 0.0
    %365 = vmatpush2.msra.mxu0 0.0
    %366 = vmatprep.subr.mxu0 0.0
    %367 = vmatpush2.msra.mxu0 0.0
    %368 = vmatprep.subr.mxu0 0.0
    %369 = vmatpush2.msra.mxu0 0.0
    %370 = vmatprep.subr.mxu0 0.0
    %371 = vmatpush2.msra.mxu0 0.0
    %372 = vmatprep.subr.mxu0 0.0
    %373 = vmatpush2.msra.mxu0 0.0
    %374 = vmatprep.subr.mxu0 0.0
    %375 = vmatpush2.msra.mxu0 0.0
    %376 = vmatprep.subr.mxu0 0.0
    %377 = vmatpush2.msra.mxu0 0.0
    %378 = vmatprep.subr.mxu0 0.0
    %379 = vmatpush2.msra.mxu0 0.0
    %380 = vmatprep.subr.mxu0 0.0
    %381 = vmatpush2.msra.mxu0 0.0
    %382 = vmatprep.subr.mxu0 0.0
    %383 = vmatpush2.msra.mxu0 0.0
    %384 = vmatprep.subr.mxu0 0.0
    %385 = vmatpush2.msra.mxu0 0.0
    %386 = vmatprep.subr.mxu0 0.0
    %387 = vmatpush2.msra.mxu0 0.0
    %388 = vmatprep.subr.mxu0 0.0
    %389 = vmatpush2.msra.mxu0 0.0
    %390 = vmatprep.subr.mxu0 0.0
    %391 = vmatpush2.msra.mxu0 0.0
    %392 = vmatprep.mubr.f32.mxu0 0.0
    %393 = vmatmul.mubr.f32.gmra.mxu0 %v184
    %v394 = vpop.f32.mrf.mxu0
    %v395 = vadd.f32 %v161, %v394
    %v396 = vpop.f32.mrf.mxu0
    %v397 = vadd.f32 %v165, %v396
    %398 = vdwg.mxu0
    %399 = vmatprep.subr.mxu0 0.0
    %400 = vmatpush1.msra.mxu0 0.0
    %401 = vmatprep.subr.mxu0 0.0
    %402 = vmatpush1.msra.mxu0 0.0
    %403 = vmatprep.subr.mxu0 0.0
    %404 = vmatpush1.msra.mxu0 0.0
    %405 = vmatprep.subr.mxu0 0.0
    %406 = vmatpush1.msra.mxu0 0.0
    %407 = vmatprep.subr.mxu0 0.0
    %408 = vmatpush1.msra.mxu0 0.0
    %409 = vmatprep.subr.mxu0 0.0
    %410 = vmatpush1.msra.mxu0 0.0
    %411 = vmatprep.subr.mxu0 0.0
    %412 = vmatpush1.msra.mxu0 0.0
    %413 = vmatprep.subr.mxu0 0.0
    %414 = vmatpush1.msra.mxu0 0.0
    %415 = vmatprep.subr.mxu0 0.0
    %416 = vmatpush1.msra.mxu0 0.0
    %417 = vmatprep.subr.mxu0 0.0
    %418 = vmatpush1.msra.mxu0 0.0
    %419 = vmatprep.subr.mxu0 0.0
    %420 = vmatpush1.msra.mxu0 0.0
    %421 = vmatprep.subr.mxu0 0.0
    %422 = vmatpush1.msra.mxu0 0.0
    %423 = vmatprep.subr.mxu0 0.0
    %424 = vmatpush1.msra.mxu0 0.0
    %425 = vmatprep.subr.mxu0 0.0
    %426 = vmatpush1.msra.mxu0 0.0
    %427 = vmatprep.subr.mxu0 %v139
    %428 = vmatpush1.msra.mxu0 %v138
    %429 = vmatprep.subr.mxu0 %v131
    %430 = vmatpush1.msra.mxu0 %v130
    %431 = vmatprep.subr.mxu0 0.0
    %432 = vmatpush2.msra.mxu0 0.0
    %433 = vmatprep.subr.mxu0 0.0
    %434 = vmatpush2.msra.mxu0 0.0
    %435 = vmatprep.subr.mxu0 0.0
    %436 = vmatpush2.msra.mxu0 0.0
    %437 = vmatprep.subr.mxu0 0.0
    %438 = vmatpush2.msra.mxu0 0.0
    %439 = vmatprep.subr.mxu0 0.0
    %440 = vmatpush2.msra.mxu0 0.0
    %441 = vmatprep.subr.mxu0 0.0
    %442 = vmatpush2.msra.mxu0 0.0
    %443 = vmatprep.subr.mxu0 0.0
    %444 = vmatpush2.msra.mxu0 0.0
    %445 = vmatprep.subr.mxu0 0.0
    %446 = vmatpush2.msra.mxu0 0.0
    %447 = vmatprep.subr.mxu0 0.0
    %448 = vmatpush2.msra.mxu0 0.0
    %449 = vmatprep.subr.mxu0 0.0
    %450 = vmatpush2.msra.mxu0 0.0
    %451 = vmatprep.subr.mxu0 0.0
    %452 = vmatpush2.msra.mxu0 0.0
    %453 = vmatprep.subr.mxu0 0.0
    %454 = vmatpush2.msra.mxu0 0.0
    %455 = vmatprep.subr.mxu0 0.0
    %456 = vmatpush2.msra.mxu0 0.0
    %457 = vmatprep.subr.mxu0 0.0
    %458 = vmatpush2.msra.mxu0 0.0
    %459 = vmatprep.subr.mxu0 0.0
    %460 = vmatpush2.msra.mxu0 0.0
    %461 = vmatprep.subr.mxu0 0.0
    %462 = vmatpush2.msra.mxu0 0.0
    %463 = vmatprep.mubr.f32.mxu0 0.0
    %464 = vmatmul.mubr.f32.gmra.mxu0 %v184
    %v465 = vpop.f32.mrf.mxu0
    %v466 = vadd.f32 %v169, %v465
    %v467 = vpop.f32.mrf.mxu0
    %v468 = vadd.f32 %v173, %v467
    %469 = vdwg.mxu0
    %v470 = vmax.f32 %v253, 0.0
    %v471 = vmax.f32 %v255, 0.0
    %v472 = vmax.f32 %v324, 0.0
    %v473 = vmax.f32 %v326, 0.0
    %v474 = vmax.f32 %v395, 0.0
    %v475 = vmax.f32 %v397, 0.0
    %v476 = vmax.f32 %v466, 0.0
    %v477 = vmax.f32 %v468, 0.0
    %478 = vst [vmem:[#allocation2] sm:$0x3] %v470
    %479 = vst [vmem:[#allocation2 + $0x2] sm:$0x3] %v471
    %480 = vst [vmem:[#allocation2 + $0x4] sm:$0x3] %v472
    %481 = vst [vmem:[#allocation2 + $0x6] sm:$0x3] %v473
    %482 = vst [vmem:[#allocation2 + $0x8] sm:$0x3] %v474
    %483 = vst [vmem:[#allocation2 + $0xa] sm:$0x3] %v475
    %484 = vst [vmem:[#allocation2 + $0xc] sm:$0x3] %v476
    %485 = vst [vmem:[#allocation2 + $0xe] sm:$0x3] %v477
    %v486 = vld [vmem:[#allocation2] sm:$0xff]
    %v487 = vld [vmem:[#allocation2 + $0x8] sm:$0x3f]
    %v488 = vld [vmem:[#allocation8] sm:$0xff]
    %v489 = vld [vmem:[#allocation8 + $0x8] sm:$0xff]
    %v490 = vld [vmem:[#allocation8 + $0x10] sm:$0xff]
    %v491 = vld [vmem:[#allocation8 + $0x18] sm:$0xff]
    %v492 = vld [vmem:[#allocation8 + $0x20] sm:$0xff]
    %v493 = vld [vmem:[#allocation8 + $0x28] sm:$0xff]
    %v494 = vld [vmem:[#allocation8 + $0x30] sm:$0xff]
    %v495 = vld [vmem:[#allocation8 + $0x38] sm:$0xff]
    %v496 = vld [vmem:[#allocation8 + $0x40] sm:$0xff]
    %v497 = vld [vmem:[#allocation8 + $0x48] sm:$0xff]
    %v498 = vld [vmem:[#allocation8 + $0x50] sm:$0xff]
    %v499 = vld [vmem:[#allocation8 + $0x58] sm:$0xff]
    %v500 = vld [vmem:[#allocation8 + $0x60] sm:$0xff]
    %v501 = vld [vmem:[#allocation8 + $0x68] sm:$0xff]
    %v502 = vld [vmem:[#allocation8 + $0x70] sm:$0xff]
    %v503 = vld [vmem:[#allocation8 + $0x78] sm:$0xff]
    %v504 = vld [vmem:[#allocation8 + $0x80] sm:$0xff]
    %v505 = vld [vmem:[#allocation8 + $0x88] sm:$0xff]
    %v506 = vld [vmem:[#allocation8 + $0x90] sm:$0xff]
    %v507 = vld [vmem:[#allocation8 + $0x98] sm:$0xff]
    %v508 = vld [vmem:[#allocation8 + $0xa0] sm:$0xff]
    %v509 = vld [vmem:[#allocation8 + $0xa8] sm:$0xff]
    %v510 = vld [vmem:[#allocation8 + $0xb0] sm:$0xff]
    %v511 = vld [vmem:[#allocation8 + $0xb8] sm:$0xff]
    %v512 = vld [vmem:[#allocation8 + $0xc0] sm:$0xff]
    %v513 = vld [vmem:[#allocation8 + $0xc8] sm:$0xff]
    %v514 = vld [vmem:[#allocation8 + $0xd0] sm:$0xff]
    %v515 = vld [vmem:[#allocation8 + $0xd8] sm:$0xff]
    %v516 = vld [vmem:[#allocation8 + $0xe0] sm:$0xff]
    %v517 = vld [vmem:[#allocation8 + $0xe8] sm:$0xff]
    %v518 = vld [vmem:[#allocation8 + $0xf0] sm:$0xff]
    %v519 = vld [vmem:[#allocation8 + $0xf8] sm:$0xff]
    %v520 = vld [vmem:[#allocation2 + $0x2] sm:$0xff]
    %v521 = vld [vmem:[#allocation2 + $0xa] sm:$0x3f]
    %v522 = vld [vmem:[#allocation9] sm:$0xff]
    %v523 = vld [vmem:[#allocation9 + $0x8] sm:$0xff]
    %v524 = vld [vmem:[#allocation9 + $0x10] sm:$0xff]
    %v525 = vld [vmem:[#allocation9 + $0x18] sm:$0xff]
    %v526 = vld [vmem:[#allocation9 + $0x20] sm:$0xff]
    %v527 = vld [vmem:[#allocation9 + $0x28] sm:$0xff]
    %v528 = vld [vmem:[#allocation9 + $0x30] sm:$0xff]
    %v529 = vld [vmem:[#allocation9 + $0x38] sm:$0xff]
    %v530 = vld [vmem:[#allocation9 + $0x40] sm:$0xff]
    %v531 = vld [vmem:[#allocation9 + $0x48] sm:$0xff]
    %v532 = vld [vmem:[#allocation9 + $0x50] sm:$0xff]
    %v533 = vld [vmem:[#allocation9 + $0x58] sm:$0xff]
    %v534 = vld [vmem:[#allocation9 + $0x60] sm:$0xff]
    %v535 = vld [vmem:[#allocation9 + $0x68] sm:$0xff]
    %v536 = vld [vmem:[#allocation9 + $0x70] sm:$0xff]
    %v537 = vld [vmem:[#allocation9 + $0x78] sm:$0xff]
    %v538 = vld [vmem:[#allocation9 + $0x80] sm:$0xff]
    %v539 = vld [vmem:[#allocation9 + $0x88] sm:$0xff]
    %v540 = vld [vmem:[#allocation9 + $0x90] sm:$0xff]
    %v541 = vld [vmem:[#allocation9 + $0x98] sm:$0xff]
    %v542 = vld [vmem:[#allocation9 + $0xa0] sm:$0xff]
    %v543 = vld [vmem:[#allocation9 + $0xa8] sm:$0xff]
    %v544 = vld [vmem:[#allocation9 + $0xb0] sm:$0xff]
    %v545 = vld [vmem:[#allocation9 + $0xb8] sm:$0xff]
    %v546 = vld [vmem:[#allocation9 + $0xc0] sm:$0xff]
    %v547 = vld [vmem:[#allocation9 + $0xc8] sm:$0xff]
    %v548 = vld [vmem:[#allocation9 + $0xd0] sm:$0xff]
    %v549 = vld [vmem:[#allocation9 + $0xd8] sm:$0xff]
    %v550 = vld [vmem:[#allocation9 + $0xe0] sm:$0xff]
    %v551 = vld [vmem:[#allocation9 + $0xe8] sm:$0xff]
    %v552 = vld [vmem:[#allocation9 + $0xf0] sm:$0xff]
    %v553 = vld [vmem:[#allocation9 + $0xf8] sm:$0xff]
    %554 = vmatprep.subr.mxu0 %v553
    %555 = vmatpush1.msra.mxu0 %v552
    %556 = vmatprep.subr.mxu0 %v551
    %557 = vmatpush1.msra.mxu0 %v550
    %558 = vmatprep.subr.mxu0 %v549
    %559 = vmatpush1.msra.mxu0 %v548
    %560 = vmatprep.subr.mxu0 %v547
    %561 = vmatpush1.msra.mxu0 %v546
    %562 = vmatprep.subr.mxu0 %v545
    %563 = vmatpush1.msra.mxu0 %v544
    %564 = vmatprep.subr.mxu0 %v543
    %565 = vmatpush1.msra.mxu0 %v542
    %566 = vmatprep.subr.mxu0 %v541
    %567 = vmatpush1.msra.mxu0 %v540
    %568 = vmatprep.subr.mxu0 %v539
    %569 = vmatpush1.msra.mxu0 %v538
    %570 = vmatprep.subr.mxu0 %v537
    %571 = vmatpush1.msra.mxu0 %v536
    %572 = vmatprep.subr.mxu0 %v535
    %573 = vmatpush1.msra.mxu0 %v534
    %574 = vmatprep.subr.mxu0 %v533
    %575 = vmatpush1.msra.mxu0 %v532
    %576 = vmatprep.subr.mxu0 %v531
    %577 = vmatpush1.msra.mxu0 %v530
    %578 = vmatprep.subr.mxu0 %v529
    %579 = vmatpush1.msra.mxu0 %v528
    %580 = vmatprep.subr.mxu0 %v527
    %581 = vmatpush1.msra.mxu0 %v526
    %582 = vmatprep.subr.mxu0 %v525
    %583 = vmatpush1.msra.mxu0 %v524
    %584 = vmatprep.subr.mxu0 %v523
    %585 = vmatpush1.msra.mxu0 %v522
    %586 = vmatprep.subr.mxu0 0.0
    %587 = vmatpush2.msra.mxu0 0.0
    %588 = vmatprep.subr.mxu0 0.0
    %589 = vmatpush2.msra.mxu0 0.0
    %590 = vmatprep.subr.mxu0 0.0
    %591 = vmatpush2.msra.mxu0 0.0
    %592 = vmatprep.subr.mxu0 0.0
    %593 = vmatpush2.msra.mxu0 0.0
    %594 = vmatprep.subr.mxu0 0.0
    %595 = vmatpush2.msra.mxu0 0.0
    %596 = vmatprep.subr.mxu0 0.0
    %597 = vmatpush2.msra.mxu0 0.0
    %598 = vmatprep.subr.mxu0 0.0
    %599 = vmatpush2.msra.mxu0 0.0
    %600 = vmatprep.subr.mxu0 0.0
    %601 = vmatpush2.msra.mxu0 0.0
    %602 = vmatprep.subr.mxu0 0.0
    %603 = vmatpush2.msra.mxu0 0.0
    %604 = vmatprep.subr.mxu0 0.0
    %605 = vmatpush2.msra.mxu0 0.0
    %606 = vmatprep.subr.mxu0 0.0
    %607 = vmatpush2.msra.mxu0 0.0
    %608 = vmatprep.subr.mxu0 0.0
    %609 = vmatpush2.msra.mxu0 0.0
    %610 = vmatprep.subr.mxu0 0.0
    %611 = vmatpush2.msra.mxu0 0.0
    %612 = vmatprep.subr.mxu0 0.0
    %613 = vmatpush2.msra.mxu0 0.0
    %614 = vmatprep.subr.mxu0 0.0
    %615 = vmatpush2.msra.mxu0 0.0
    %616 = vmatprep.subr.mxu0 0.0
    %617 = vmatpush2.msra.mxu0 0.0
    %618 = vmatprep.mubr.f32.mxu0 0.0
    %619 = vmatmul.mubr.f32.gmra.mxu0 %v520
    %v620 = vpop.f32.mrf.mxu0
    %v621 = vadd.f32 0.0, %v620
    %v622 = vpop.f32.mrf.mxu0
    %v623 = vadd.f32 0.0, %v622
    %624 = vmatprep.mubr.f32.mxu0 0.0
    %625 = vmatmul.mubr.f32.gmra.mxu0 %v521
    %v626 = vpop.f32.mrf.mxu0
    %v627 = vadd.f32 0.0, %v626
    %v628 = vpop.f32.mrf.mxu0
    %v629 = vadd.f32 0.0, %v628
    %630 = vdwg.mxu0
    %631 = vmatprep.subr.mxu0 %v519
    %632 = vmatpush1.msra.mxu0 %v518
    %633 = vmatprep.subr.mxu0 %v517
    %634 = vmatpush1.msra.mxu0 %v516
    %635 = vmatprep.subr.mxu0 %v515
    %636 = vmatpush1.msra.mxu0 %v514
    %637 = vmatprep.subr.mxu0 %v513
    %638 = vmatpush1.msra.mxu0 %v512
    %639 = vmatprep.subr.mxu0 %v511
    %640 = vmatpush1.msra.mxu0 %v510
    %641 = vmatprep.subr.mxu0 %v509
    %642 = vmatpush1.msra.mxu0 %v508
    %643 = vmatprep.subr.mxu0 %v507
    %644 = vmatpush1.msra.mxu0 %v506
    %645 = vmatprep.subr.mxu0 %v505
    %646 = vmatpush1.msra.mxu0 %v504
    %647 = vmatprep.subr.mxu0 %v503
    %648 = vmatpush1.msra.mxu0 %v502
    %649 = vmatprep.subr.mxu0 %v501
    %650 = vmatpush1.msra.mxu0 %v500
    %651 = vmatprep.subr.mxu0 %v499
    %652 = vmatpush1.msra.mxu0 %v498
    %653 = vmatprep.subr.mxu0 %v497
    %654 = vmatpush1.msra.mxu0 %v496
    %655 = vmatprep.subr.mxu0 %v495
    %656 = vmatpush1.msra.mxu0 %v494
    %657 = vmatprep.subr.mxu0 %v493
    %658 = vmatpush1.msra.mxu0 %v492
    %659 = vmatprep.subr.mxu0 %v491
    %660 = vmatpush1.msra.mxu0 %v490
    %661 = vmatprep.subr.mxu0 %v489
    %662 = vmatpush1.msra.mxu0 %v488
    %663 = vmatprep.subr.mxu0 0.0
    %664 = vmatpush2.msra.mxu0 0.0
    %665 = vmatprep.subr.mxu0 0.0
    %666 = vmatpush2.msra.mxu0 0.0
    %667 = vmatprep.subr.mxu0 0.0
    %668 = vmatpush2.msra.mxu0 0.0
    %669 = vmatprep.subr.mxu0 0.0
    %670 = vmatpush2.msra.mxu0 0.0
    %671 = vmatprep.subr.mxu0 0.0
    %672 = vmatpush2.msra.mxu0 0.0
    %673 = vmatprep.subr.mxu0 0.0
    %674 = vmatpush2.msra.mxu0 0.0
    %675 = vmatprep.subr.mxu0 0.0
    %676 = vmatpush2.msra.mxu0 0.0
    %677 = vmatprep.subr.mxu0 0.0
    %678 = vmatpush2.msra.mxu0 0.0
    %679 = vmatprep.subr.mxu0 0.0
    %680 = vmatpush2.msra.mxu0 0.0
    %681 = vmatprep.subr.mxu0 0.0
    %682 = vmatpush2.msra.mxu0 0.0
    %683 = vmatprep.subr.mxu0 0.0
    %684 = vmatpush2.msra.mxu0 0.0
    %685 = vmatprep.subr.mxu0 0.0
    %686 = vmatpush2.msra.mxu0 0.0
    %687 = vmatprep.subr.mxu0 0.0
    %688 = vmatpush2.msra.mxu0 0.0
    %689 = vmatprep.subr.mxu0 0.0
    %690 = vmatpush2.msra.mxu0 0.0
    %691 = vmatprep.subr.mxu0 0.0
    %692 = vmatpush2.msra.mxu0 0.0
    %693 = vmatprep.subr.mxu0 0.0
    %694 = vmatpush2.msra.mxu0 0.0
    %695 = vmatprep.mubr.f32.mxu0 0.0
    %696 = vmatmul.mubr.f32.gmra.mxu0 %v486
    %v697 = vpop.f32.mrf.mxu0
    %v698 = vadd.f32 %v621, %v697
    %v699 = vpop.f32.mrf.mxu0
    %v700 = vadd.f32 %v623, %v699
    %701 = vmatprep.mubr.f32.mxu0 0.0
    %702 = vmatmul.mubr.f32.gmra.mxu0 %v487
    %v703 = vpop.f32.mrf.mxu0
    %v704 = vadd.f32 %v627, %v703
    %v705 = vpop.f32.mrf.mxu0
    %v706 = vadd.f32 %v629, %v705
    %707 = vdwg.mxu0
    %v708 = vld [vmem:[#allocation11] sm:$0x3]
    %v710 = vlaneseq
    %v711 = vshrl.u32 %v710, 7
    %v712 = vsub.s32 0, %v711
    %v713 = vrot.slane %v708, %v712
    %v714 = vlaneseq
    %v715 = vshrl.u32 %v714, 7
    %v716 = vsub.s32 1, %v715
    %v717 = vrot.slane %v708, %v716
    %v720 = vadd.f32 %v698, %v713
    %v721 = vadd.f32 %v700, %v717
    %v722 = vadd.f32 %v704, %v713
    %v723 = vadd.f32 %v706, %v717
    %v724 = vmax.f32 %v720, 0.0
    %v725 = vmax.f32 %v721, 0.0
    %v726 = vmax.f32 %v722, 0.0
    %v727 = vmax.f32 %v723, 0.0
    %728 = vst [vmem:[#allocation3] sm:$0xff] %v724
    %729 = vst [vmem:[#allocation3 + $0x8] sm:$0xff] %v725
    %730 = vst [vmem:[#allocation3 + $0x10] sm:$0x3f] %v726
    %731 = vst [vmem:[#allocation3 + $0x18] sm:$0x3f] %v727
    %732 = vst [vmem:[#allocation3 + $0x10] sm:$0xc0] 0.0
    %733 = vst [vmem:[#allocation3 + $0x18] sm:$0xc0] 0.0
    %v734 = vld [vmem:[#allocation3] sm:$0xff]
    %v735 = vld [vmem:[#allocation3 + $0x8] sm:$0xff]
    %v736 = vld [vmem:[#allocation3 + $0x10] sm:$0x3f]
    %v737 = vld [vmem:[#allocation3 + $0x18] sm:$0x3f]
    %v738 = vld [vmem:[#allocation12] sm:$0xff]
    %v739 = vld [vmem:[#allocation12 + $0x8] sm:$0xff]
    %v740 = vld [vmem:[#allocation12 + $0x10] sm:$0xff]
    %v741 = vld [vmem:[#allocation12 + $0x18] sm:$0xff]
    %v742 = vld [vmem:[#allocation12 + $0x20] sm:$0xff]
    %v743 = vld [vmem:[#allocation12 + $0x28] sm:$0xff]
    %v744 = vld [vmem:[#allocation12 + $0x30] sm:$0xff]
    %v745 = vld [vmem:[#allocation12 + $0x38] sm:$0xff]
    %v746 = vld [vmem:[#allocation12 + $0x40] sm:$0xff]
    %v747 = vld [vmem:[#allocation12 + $0x48] sm:$0xff]
    %v748 = vld [vmem:[#allocation12 + $0x50] sm:$0xff]
    %v749 = vld [vmem:[#allocation12 + $0x58] sm:$0xff]
    %v750 = vld [vmem:[#allocation12 + $0x60] sm:$0xff]
    %v751 = vld [vmem:[#allocation12 + $0x68] sm:$0xff]
    %v752 = vld [vmem:[#allocation12 + $0x70] sm:$0xff]
    %v753 = vld [vmem:[#allocation12 + $0x78] sm:$0xff]
    %v754 = vld [vmem:[#allocation12 + $0x80] sm:$0xff]
    %v755 = vld [vmem:[#allocation12 + $0x88] sm:$0xff]
    %v756 = vld [vmem:[#allocation12 + $0x90] sm:$0xff]
    %v757 = vld [vmem:[#allocation12 + $0x98] sm:$0xff]
    %v758 = vld [vmem:[#allocation12 + $0xa0] sm:$0xff]
    %v759 = vld [vmem:[#allocation12 + $0xa8] sm:$0xff]
    %v760 = vld [vmem:[#allocation12 + $0xb0] sm:$0xff]
    %v761 = vld [vmem:[#allocation12 + $0xb8] sm:$0xff]
    %v762 = vld [vmem:[#allocation12 + $0xc0] sm:$0xff]
    %v763 = vld [vmem:[#allocation12 + $0xc8] sm:$0xff]
    %v764 = vld [vmem:[#allocation12 + $0xd0] sm:$0xff]
    %v765 = vld [vmem:[#allocation12 + $0xd8] sm:$0xff]
    %v766 = vld [vmem:[#allocation12 + $0xe0] sm:$0xff]
    %v767 = vld [vmem:[#allocation12 + $0xe8] sm:$0xff]
    %v768 = vld [vmem:[#allocation12 + $0xf0] sm:$0xff]
    %v769 = vld [vmem:[#allocation12 + $0xf8] sm:$0xff]
    %v770 = vld [vmem:[#allocation3] sm:$0xfc]
    %v771 = vld [vmem:[#allocation3 + $0x8] sm:$0xfc]
    %v772 = vld [vmem:[#allocation3 + $0x10] sm:$0xff]
    %v773 = vld [vmem:[#allocation3 + $0x18] sm:$0xff]
    %v774 = vld [vmem:[#allocation14] sm:$0xff]
    %v775 = vld [vmem:[#allocation14 + $0x8] sm:$0xff]
    %v776 = vld [vmem:[#allocation14 + $0x10] sm:$0xff]
    %v777 = vld [vmem:[#allocation14 + $0x18] sm:$0xff]
    %v778 = vld [vmem:[#allocation14 + $0x20] sm:$0xff]
    %v779 = vld [vmem:[#allocation14 + $0x28] sm:$0xff]
    %v780 = vld [vmem:[#allocation14 + $0x30] sm:$0xff]
    %v781 = vld [vmem:[#allocation14 + $0x38] sm:$0xff]
    %v782 = vld [vmem:[#allocation14 + $0x40] sm:$0xff]
    %v783 = vld [vmem:[#allocation14 + $0x48] sm:$0xff]
    %v784 = vld [vmem:[#allocation14 + $0x50] sm:$0xff]
    %v785 = vld [vmem:[#allocation14 + $0x58] sm:$0xff]
    %v786 = vld [vmem:[#allocation14 + $0x60] sm:$0xff]
    %v787 = vld [vmem:[#allocation14 + $0x68] sm:$0xff]
    %v788 = vld [vmem:[#allocation14 + $0x70] sm:$0xff]
    %v789 = vld [vmem:[#allocation14 + $0x78] sm:$0xff]
    %v790 = vld [vmem:[#allocation14 + $0x80] sm:$0xff]
    %v791 = vld [vmem:[#allocation14 + $0x88] sm:$0xff]
    %v792 = vld [vmem:[#allocation14 + $0x90] sm:$0xff]
    %v793 = vld [vmem:[#allocation14 + $0x98] sm:$0xff]
    %v794 = vld [vmem:[#allocation14 + $0xa0] sm:$0xff]
    %v795 = vld [vmem:[#allocation14 + $0xa8] sm:$0xff]
    %v796 = vld [vmem:[#allocation14 + $0xb0] sm:$0xff]
    %v797 = vld [vmem:[#allocation14 + $0xb8] sm:$0xff]
    %v798 = vld [vmem:[#allocation14 + $0xc0] sm:$0xff]
    %v799 = vld [vmem:[#allocation14 + $0xc8] sm:$0xff]
    %v800 = vld [vmem:[#allocation14 + $0xd0] sm:$0xff]
    %v801 = vld [vmem:[#allocation14 + $0xd8] sm:$0xff]
    %v802 = vld [vmem:[#allocation14 + $0xe0] sm:$0xff]
    %v803 = vld [vmem:[#allocation14 + $0xe8] sm:$0xff]
    %v804 = vld [vmem:[#allocation14 + $0xf0] sm:$0xff]
    %v805 = vld [vmem:[#allocation14 + $0xf8] sm:$0xff]
    %vm810 = vcmask 1045504
    %v811 = vrot.slane %v770, 2
    %v812 = vrot.slane %v772, 2
    %v813 = vsel %vm810, %v811, %v812
    %v814 = vrot.slane %v771, 2
    %v815 = vrot.slane %v773, 2
    %v816 = vsel %vm810, %v814, %v815
    %821 = vmatprep.subr.mxu0 0.0
    %822 = vmatpush1.msra.mxu0 %v789
    %823 = vmatprep.subr.mxu0 0.0
    %824 = vmatpush1.msra.mxu0 %v788
    %825 = vmatprep.subr.mxu0 0.0
    %826 = vmatpush1.msra.mxu0 %v787
    %827 = vmatprep.subr.mxu0 0.0
    %828 = vmatpush1.msra.mxu0 %v786
    %829 = vmatprep.subr.mxu0 0.0
    %830 = vmatpush1.msra.mxu0 %v785
    %831 = vmatprep.subr.mxu0 0.0
    %832 = vmatpush1.msra.mxu0 %v784
    %833 = vmatprep.subr.mxu0 0.0
    %834 = vmatpush1.msra.mxu0 %v783
    %835 = vmatprep.subr.mxu0 0.0
    %836 = vmatpush1.msra.mxu0 %v782
    %837 = vmatprep.subr.mxu0 0.0
    %838 = vmatpush1.msra.mxu0 %v781
    %839 = vmatprep.subr.mxu0 0.0
    %840 = vmatpush1.msra.mxu0 %v780
    %841 = vmatprep.subr.mxu0 0.0
    %842 = vmatpush1.msra.mxu0 %v779
    %843 = vmatprep.subr.mxu0 0.0
    %844 = vmatpush1.msra.mxu0 %v778
    %845 = vmatprep.subr.mxu0 0.0
    %846 = vmatpush1.msra.mxu0 %v777
    %847 = vmatprep.subr.mxu0 0.0
    %848 = vmatpush1.msra.mxu0 %v776
    %849 = vmatprep.subr.mxu0 0.0
    %850 = vmatpush1.msra.mxu0 %v775
    %851 = vmatprep.subr.mxu0 0.0
    %852 = vmatpush1.msra.mxu0 %v774
    %853 = vmatprep.subr.mxu0 0.0
    %854 = vmatpush2.msra.mxu0 %v805
    %855 = vmatprep.subr.mxu0 0.0
    %856 = vmatpush2.msra.mxu0 %v804
    %857 = vmatprep.subr.mxu0 0.0
    %858 = vmatpush2.msra.mxu0 %v803
    %859 = vmatprep.subr.mxu0 0.0
    %860 = vmatpush2.msra.mxu0 %v802
    %861 = vmatprep.subr.mxu0 0.0
    %862 = vmatpush2.msra.mxu0 %v801
    %863 = vmatprep.subr.mxu0 0.0
    %864 = vmatpush2.msra.mxu0 %v800
    %865 = vmatprep.subr.mxu0 0.0
    %866 = vmatpush2.msra.mxu0 %v799
    %867 = vmatprep.subr.mxu0 0.0
    %868 = vmatpush2.msra.mxu0 %v798
    %869 = vmatprep.subr.mxu0 0.0
    %870 = vmatpush2.msra.mxu0 %v797
    %871 = vmatprep.subr.mxu0 0.0
    %872 = vmatpush2.msra.mxu0 %v796
    %873 = vmatprep.subr.mxu0 0.0
    %874 = vmatpush2.msra.mxu0 %v795
    %875 = vmatprep.subr.mxu0 0.0
    %876 = vmatpush2.msra.mxu0 %v794
    %877 = vmatprep.subr.mxu0 0.0
    %878 = vmatpush2.msra.mxu0 %v793
    %879 = vmatprep.subr.mxu0 0.0
    %880 = vmatpush2.msra.mxu0 %v792
    %881 = vmatprep.subr.mxu0 0.0
    %882 = vmatpush2.msra.mxu0 %v791
    %883 = vmatprep.subr.mxu0 0.0
    %884 = vmatpush2.msra.mxu0 %v790
    %885 = vmatprep.mubr.f32.mxu0 %v816
    %886 = vmatmul.mubr.f32.gmra.mxu0 %v813
    %v887 = vpop.f32.mrf.mxu0
    %v888 = vadd.f32 0.0, %v887
    %v889 = vpop.f32.mrf.mxu0
    %890 = vmatprep.mubr.f32.mxu0 %v815
    %891 = vmatmul.mubr.f32.gmra.mxu0 %v812
    %v892 = vpop.f32.mrf.mxu0
    %v893 = vadd.f32 0.0, %v892
    %v894 = vpop.f32.mrf.mxu0
    %895 = vdwg.mxu0
    %896 = vmatprep.subr.mxu0 0.0
    %897 = vmatpush1.msra.mxu0 %v753
    %898 = vmatprep.subr.mxu0 0.0
    %899 = vmatpush1.msra.mxu0 %v752
    %900 = vmatprep.subr.mxu0 0.0
    %901 = vmatpush1.msra.mxu0 %v751
    %902 = vmatprep.subr.mxu0 0.0
    %903 = vmatpush1.msra.mxu0 %v750
    %904 = vmatprep.subr.mxu0 0.0
    %905 = vmatpush1.msra.mxu0 %v749
    %906 = vmatprep.subr.mxu0 0.0
    %907 = vmatpush1.msra.mxu0 %v748
    %908 = vmatprep.subr.mxu0 0.0
    %909 = vmatpush1.msra.mxu0 %v747
    %910 = vmatprep.subr.mxu0 0.0
    %911 = vmatpush1.msra.mxu0 %v746
    %912 = vmatprep.subr.mxu0 0.0
    %913 = vmatpush1.msra.mxu0 %v745
    %914 = vmatprep.subr.mxu0 0.0
    %915 = vmatpush1.msra.mxu0 %v744
    %916 = vmatprep.subr.mxu0 0.0
    %917 = vmatpush1.msra.mxu0 %v743
    %918 = vmatprep.subr.mxu0 0.0
    %919 = vmatpush1.msra.mxu0 %v742
    %920 = vmatprep.subr.mxu0 0.0
    %921 = vmatpush1.msra.mxu0 %v741
    %922 = vmatprep.subr.mxu0 0.0
    %923 = vmatpush1.msra.mxu0 %v740
    %924 = vmatprep.subr.mxu0 0.0
    %925 = vmatpush1.msra.mxu0 %v739
    %926 = vmatprep.subr.mxu0 0.0
    %927 = vmatpush1.msra.mxu0 %v738
    %928 = vmatprep.subr.mxu0 0.0
    %929 = vmatpush2.msra.mxu0 %v769
    %930 = vmatprep.subr.mxu0 0.0
    %931 = vmatpush2.msra.mxu0 %v768
    %932 = vmatprep.subr.mxu0 0.0
    %933 = vmatpush2.msra.mxu0 %v767
    %934 = vmatprep.subr.mxu0 0.0
    %935 = vmatpush2.msra.mxu0 %v766
    %936 = vmatprep.subr.mxu0 0.0
    %937 = vmatpush2.msra.mxu0 %v765
    %938 = vmatprep.subr.mxu0 0.0
    %939 = vmatpush2.msra.mxu0 %v764
    %940 = vmatprep.subr.mxu0 0.0
    %941 = vmatpush2.msra.mxu0 %v763
    %942 = vmatprep.subr.mxu0 0.0
    %943 = vmatpush2.msra.mxu0 %v762
    %944 = vmatprep.subr.mxu0 0.0
    %945 = vmatpush2.msra.mxu0 %v761
    %946 = vmatprep.subr.mxu0 0.0
    %947 = vmatpush2.msra.mxu0 %v760
    %948 = vmatprep.subr.mxu0 0.0
    %949 = vmatpush2.msra.mxu0 %v759
    %950 = vmatprep.subr.mxu0 0.0
    %951 = vmatpush2.msra.mxu0 %v758
    %952 = vmatprep.subr.mxu0 0.0
    %953 = vmatpush2.msra.mxu0 %v757
    %954 = vmatprep.subr.mxu0 0.0
    %955 = vmatpush2.msra.mxu0 %v756
    %956 = vmatprep.subr.mxu0 0.0
    %957 = vmatpush2.msra.mxu0 %v755
    %958 = vmatprep.subr.mxu0 0.0
    %959 = vmatpush2.msra.mxu0 %v754
    %960 = vmatprep.mubr.f32.mxu0 %v735
    %961 = vmatmul.mubr.f32.gmra.mxu0 %v734
    %v962 = vpop.f32.mrf.mxu0
    %v963 = vadd.f32 %v888, %v962
    %v964 = vpop.f32.mrf.mxu0
    %965 = vmatprep.mubr.f32.mxu0 %v737
    %966 = vmatmul.mubr.f32.gmra.mxu0 %v736
    %v967 = vpop.f32.mrf.mxu0
    %v968 = vadd.f32 %v893, %v967
    %v969 = vpop.f32.mrf.mxu0
    %970 = vdwg.mxu0
    %v971 = vld [vmem:[%s8] sm:$0x1]
    %v973 = vlaneseq
    %v974 = vshrl.u32 %v973, 7
    %v975 = vsub.s32 0, %v974
    %v976 = vrot.slane %v971, %v975
    %v978 = vadd.f32 %v963, %v976
    %v979 = vadd.f32 %v968, %v976
    %v980 = vmul.f32 %v978, 0.5
    %v981 = vmul.f32 %v979, 0.5
    %v982 = vtanh.pop %v980
    %v983 = vtanh.pop %v981
    %v984 = vadd.f32 %v982, 1.0
    %v985 = vadd.f32 %v983, 1.0
    %v986 = vmul.f32 %v984, 0.5
    %v987 = vmul.f32 %v985, 0.5
    %988 = vst [vmem:[%s9] sm:$0xff] %v986
    %989 = vst [vmem:[%s9 + $0x8] sm:$0x3f] %v987
    // Predicated region
    $region66: #{decoder_forward.1} parent=1 // pred_check
      _
    $region67: #{decoder_forward.1} parent=1 // pred_check_branch
      %991 = sbr.rel (0) target = $region69
    $region68: #{decoder_forward.1} parent=1 // pred_region
      _
    $region69: #{decoder_forward.1} parent=1 // pred_fallthru
      _
    // Predicated region
    $region70: #{decoder_forward.1} parent=1 // pred_check
      _
    $region71: #{decoder_forward.1} parent=1 // pred_check_branch
      %993 = sbr.rel (0) target = $region73
    $region72: #{decoder_forward.1} parent=1 // pred_region
      _
    $region73: #{decoder_forward.1} parent=1 // pred_fallthru
      _
    %994 = vsyncpa [#allocation5], 1
    %995 = vsyncpa [#allocation7], 1
    %996 = vsyncpa [#allocation10], 1
    %997 = vsyncpa [#allocation13], 1

</llo_original>
